<compile_context>
chip_gen: v7x
topology: tpu7x:2x2x1
jax: 0.10.0
libtpu: 0.0.40
codegen_flags: <defaults>
</compile_context>

<pallas_src>
import jax
import jax.numpy as jnp
from jax.experimental import pallas as pl
from jax.experimental.pallas import tpu as pltpu


def _round_up(x, m):
    return (x + m - 1) // m * m


def _layernorm_f32(h, gamma, beta, eps=1e-5):
    # Fused stats: one pass for sum and sum-of-squares (biased variance, like
    # torch.nn.LayerNorm), rsqrt on the EUP.
    n = h.shape[-1]
    inv_n = 1.0 / n
    s = jnp.sum(h, axis=-1, keepdims=True)
    ss = jnp.sum(h * h, axis=-1, keepdims=True)
    mean = s * inv_n
    var = ss * inv_n - mean * mean
    return (h - mean) * jax.lax.rsqrt(var + eps) * gamma + beta


def dqn_kernel(x_ref,
               w1_ref, b1_ref, g1_ref, be1_ref,
               w2_ref, b2_ref, g2_ref, be2_ref,
               w3_ref, b3_ref,
               out_ref):
    x = x_ref[...]                        # (TB, in_dim) f32
    tb = x.shape[0]
    in_dim = x.shape[1]
    hid = w1_ref.shape[1]

    # ---- fc1 + ReLU -------------------------------------------------------
    if in_dim <= 8:
        # K is tiny: keep the MXU free, do it on the VPU as broadcast FMAs.
        w1 = w1_ref[...]                                     # (in_dim, H) f32
        h = jnp.broadcast_to(b1_ref[...], (tb, hid))
        for k in range(in_dim):
            h = h + x[:, k:k + 1] * w1[k:k + 1, :]
    else:
        h = jnp.dot(x, w1_ref[...],
                    preferred_element_type=jnp.float32) + b1_ref[...]
    h = jnp.maximum(h, 0.0)

    # LayerNorm (bn1)
    h = _layernorm_f32(h, g1_ref[...], be1_ref[...])
    # drop1: identity at inference time
    # TODO(synk): training-mode dropout (Bernoulli mask via pltpu.prng_random_bits) not emitted.

    # ---- fc2 + ReLU (dominant 256x256 matmul, bf16 operands / f32 acc) -----
    h2 = jnp.dot(h.astype(w2_ref.dtype), w2_ref[...],
                 preferred_element_type=jnp.float32) + b2_ref[...]
    h2 = jnp.maximum(h2, 0.0)

    # LayerNorm (bn2)
    h2 = _layernorm_f32(h2, g2_ref[...], be2_ref[...])
    # drop2: identity at inference time

    # ---- output head (lane-padded to 128, unmasked store) -----------------
    out_ref[...] = (jnp.dot(h2.astype(w3_ref.dtype), w3_ref[...],
                            preferred_element_type=jnp.float32)
                    + b3_ref[...])


def dqn_forward(x, params, *, block_b=1024, use_bf16=True):
    """Fused DQN forward. x: (B, input_dim) f32. Returns (B, output_dim) f32."""
    B, in_dim = x.shape
    H = params["w1"].shape[1]
    out_dim = params["w3"].shape[1]

    # --- tiling / padding ---------------------------------------------------
    TB = min(block_b, _round_up(B, 8))          # batch tile, multiple of 8
    Bp = _round_up(B, TB)                       # padded batch
    OUT_PAD = _round_up(max(out_dim, 128), 128)  # lane-dense output width

    x_p = x.astype(jnp.float32)
    if Bp != B:
        x_p = jnp.pad(x_p, ((0, Bp - B), (0, 0)))

    mat_dtype = jnp.bfloat16 if use_bf16 else jnp.float32
    w1 = params["w1"].astype(jnp.float32)        # fc1 stays on the VPU in f32
    b1 = params["b1"].astype(jnp.float32)
    g1 = params["g1"].astype(jnp.float32)
    be1 = params["be1"].astype(jnp.float32)
    w2 = params["w2"].astype(mat_dtype)
    b2 = params["b2"].astype(jnp.float32)
    g2 = params["g2"].astype(jnp.float32)
    be2 = params["be2"].astype(jnp.float32)
    # Zero-padded lane-dense head: padded columns are zero so they never leak.
    w3 = jnp.zeros((H, OUT_PAD), mat_dtype).at[:, :out_dim].set(
        params["w3"].astype(mat_dtype))
    b3 = jnp.zeros((1, OUT_PAD), jnp.float32).at[:, :out_dim].set(
        params["b3"].astype(jnp.float32))

    args = (x_p, w1, b1, g1, be1, w2, b2, g2, be2, w3, b3)

    # --- specs --------------------------------------------------------------
    const = lambda i: (0, 0)                     # weights: DMA once, stay resident
    in_specs = [
        pl.BlockSpec((TB, in_dim), lambda i: (i, 0)),   # x (pipelined over batch)
        pl.BlockSpec((in_dim, H), const),               # w1
        pl.BlockSpec((1, H), const),                    # b1
        pl.BlockSpec((1, H), const),                    # g1
        pl.BlockSpec((1, H), const),                    # be1
        pl.BlockSpec((H, H), const),                    # w2
        pl.BlockSpec((1, H), const),                    # b2
        pl.BlockSpec((1, H), const),                    # g2
        pl.BlockSpec((1, H), const),                    # be2
        pl.BlockSpec((H, OUT_PAD), const),              # w3 (padded)
        pl.BlockSpec((1, OUT_PAD), const),              # b3 (padded)
    ]
    out_specs = pl.BlockSpec((TB, OUT_PAD), lambda i: (i, 0))

    flops = 2 * Bp * (in_dim * H + H * H + H * OUT_PAD)
    bytes_accessed = int(sum(a.size * a.dtype.itemsize for a in args)
                         + Bp * OUT_PAD * 4)
    cost = pl.CostEstimate(flops=flops,
                           transcendentals=2 * Bp,     # two rsqrt per row
                           bytes_accessed=bytes_accessed)

    out_padded = pl.pallas_call(
        dqn_kernel,
        out_shape=jax.ShapeDtypeStruct((Bp, OUT_PAD), jnp.float32),
        grid=(Bp // TB,),
        in_specs=in_specs,
        out_specs=out_specs,
        compiler_params=pltpu.CompilerParams(
            dimension_semantics=("parallel",),
            vmem_limit_bytes=32 * 1024 * 1024,
        ),
        cost_estimate=cost,
    )(*args)

    return out_padded[:B, :out_dim]


def init_params(key, input_dim=3, hidden_dim=256, output_dim=2):
    ks = jax.random.split(key, 6)
    scale1 = 1.0 / jnp.sqrt(input_dim)
    scale2 = 1.0 / jnp.sqrt(hidden_dim)
    return {
        # fc1
        "w1": jax.random.normal(ks[0], (input_dim, hidden_dim), jnp.float32) * scale1,
        "b1": jax.random.normal(ks[1], (1, hidden_dim), jnp.float32) * scale1,
        # LayerNorm 1 (PyTorch default: weight=1, bias=0)
        "g1": jnp.ones((1, hidden_dim), jnp.float32),
        "be1": jnp.zeros((1, hidden_dim), jnp.float32),
        # fc2
        "w2": jax.random.normal(ks[2], (hidden_dim, hidden_dim), jnp.float32) * scale2,
        "b2": jax.random.normal(ks[3], (1, hidden_dim), jnp.float32) * scale2,
        # LayerNorm 2
        "g2": jnp.ones((1, hidden_dim), jnp.float32),
        "be2": jnp.zeros((1, hidden_dim), jnp.float32),
        # output
        "w3": jax.random.normal(ks[4], (hidden_dim, output_dim), jnp.float32) * scale2,
        "b3": jax.random.normal(ks[5], (1, output_dim), jnp.float32) * scale2,
    }


def dqn_reference(x, p):
    def ln(h, g, b, eps=1e-5):
        m = jnp.mean(h, axis=-1, keepdims=True)
        v = jnp.mean((h - m) ** 2, axis=-1, keepdims=True)
        return (h - m) * jax.lax.rsqrt(v + eps) * g + b

    h = jnp.maximum(x @ p["w1"] + p["b1"], 0.0)
    h = ln(h, p["g1"], p["be1"])
    h = jnp.maximum(h @ p["w2"] + p["b2"], 0.0)
    h = ln(h, p["g2"], p["be2"])
    return h @ p["w3"] + p["b3"]


if __name__ == "__main__":
    key = jax.random.PRNGKey(0)
    k_x, k_x2, k_p = jax.random.split(key, 3)

    B, input_dim, hidden_dim, output_dim = 8, 3, 256, 2
    x = jax.random.normal(k_x, (B, input_dim), jnp.float32)
    params = init_params(k_p, input_dim, hidden_dim, output_dim)

    # single-step grid (B=8 -> one (8, ...) tile)
    out = jax.block_until_ready(dqn_forward(x, params))
    ref = dqn_reference(x, params)
    assert out.shape == (B, output_dim)
    # bf16 MXU operands with f32 accumulation -> loose tolerance vs pure-f32 ref
    assert jnp.allclose(out, ref, atol=5e-2, rtol=5e-2), "mismatch (B=8)"

    # multi-step grid + batch padding path (B=20, TB=8 -> grid of 3, 4 pad rows)
    x2 = jax.random.normal(k_x2, (20, input_dim), jnp.float32)
    out2 = jax.block_until_ready(dqn_forward(x2, params, block_b=8))
    ref2 = dqn_reference(x2, params)
    assert out2.shape == (20, output_dim)
    assert jnp.allclose(out2, ref2, atol=5e-2, rtol=5e-2), "mismatch (B=20)"

    print("KERNEL_OK")
</pallas_src>

<mosaic_0001>
module attributes {stable_mosaic.version = 11 : i64} {
  func.func @dqn_kernel(%arg0: i32, %arg1: memref<8x3xf32, #tpu.memory_space<vmem>>, %arg2: memref<3x256xf32, #tpu.memory_space<vmem>>, %arg3: memref<1x256xf32, #tpu.memory_space<vmem>>, %arg4: memref<1x256xf32, #tpu.memory_space<vmem>>, %arg5: memref<1x256xf32, #tpu.memory_space<vmem>>, %arg6: memref<256x256xbf16, #tpu.memory_space<vmem>>, %arg7: memref<1x256xf32, #tpu.memory_space<vmem>>, %arg8: memref<1x256xf32, #tpu.memory_space<vmem>>, %arg9: memref<1x256xf32, #tpu.memory_space<vmem>>, %arg10: memref<256x128xbf16, #tpu.memory_space<vmem>>, %arg11: memref<1x128xf32, #tpu.memory_space<vmem>>, %arg12: memref<8x128xf32, #tpu.memory_space<vmem>>) attributes {dimension_semantics = [#tpu.dimension_semantics<parallel>], iteration_bounds = array<i64: 1>, scalar_prefetch = 0 : i64, scratch_operands = 0 : i64, tpu.core_type = #tpu.core_type<tc>, window_params = [{transform_indices = @transform_0, window_bounds = array<i64: 8, 3>}, {pipeline_mode = #tpu.pipeline_mode<synchronous>, transform_indices = @transform_1, window_bounds = array<i64: 3, 256>}, {pipeline_mode = #tpu.pipeline_mode<synchronous>, transform_indices = @transform_2, window_bounds = array<i64: 1, 256>}, {pipeline_mode = #tpu.pipeline_mode<synchronous>, transform_indices = @transform_3, window_bounds = array<i64: 1, 256>}, {pipeline_mode = #tpu.pipeline_mode<synchronous>, transform_indices = @transform_4, window_bounds = array<i64: 1, 256>}, {pipeline_mode = #tpu.pipeline_mode<synchronous>, transform_indices = @transform_5, window_bounds = array<i64: 256, 256>}, {pipeline_mode = #tpu.pipeline_mode<synchronous>, transform_indices = @transform_6, window_bounds = array<i64: 1, 256>}, {pipeline_mode = #tpu.pipeline_mode<synchronous>, transform_indices = @transform_7, window_bounds = array<i64: 1, 256>}, {pipeline_mode = #tpu.pipeline_mode<synchronous>, transform_indices = @transform_8, window_bounds = array<i64: 1, 256>}, {pipeline_mode = #tpu.pipeline_mode<synchronous>, transform_indices = @transform_9, window_bounds = array<i64: 256, 128>}, {pipeline_mode = #tpu.pipeline_mode<synchronous>, transform_indices = @transform_10, window_bounds = array<i64: 1, 128>}, {transform_indices = @transform_11, window_bounds = array<i64: 8, 128>}]} {
    %c0 = arith.constant 0 : index
    %c0_0 = arith.constant 0 : index
    %0 = vector.load %arg1[%c0, %c0_0] : memref<8x3xf32, #tpu.memory_space<vmem>>, vector<8x3xf32>
    %c0_1 = arith.constant 0 : index
    %c0_2 = arith.constant 0 : index
    %1 = vector.load %arg2[%c0_1, %c0_2] : memref<3x256xf32, #tpu.memory_space<vmem>>, vector<3x256xf32>
    %c0_3 = arith.constant 0 : index
    %c0_4 = arith.constant 0 : index
    %2 = vector.load %arg3[%c0_3, %c0_4] : memref<1x256xf32, #tpu.memory_space<vmem>>, vector<1x256xf32>
    %3 = vector.shape_cast %2 : vector<1x256xf32> to vector<1x256xf32>
    %4 = vector.broadcast %3 : vector<1x256xf32> to vector<8x256xf32>
    %5 = vector.extract_strided_slice %0 {offsets = [0, 0], sizes = [8, 1], strides = [1, 1]} : vector<8x3xf32> to vector<8x1xf32>
    %6 = vector.extract_strided_slice %1 {offsets = [0, 0], sizes = [1, 256], strides = [1, 1]} : vector<3x256xf32> to vector<1x256xf32>
    %7 = vector.broadcast %5 : vector<8x1xf32> to vector<8x256xf32>
    %8 = vector.broadcast %6 : vector<1x256xf32> to vector<8x256xf32>
    %9 = arith.mulf %7, %8 : vector<8x256xf32>
    %10 = arith.addf %4, %9 : vector<8x256xf32>
    %11 = vector.extract_strided_slice %0 {offsets = [0, 1], sizes = [8, 1], strides = [1, 1]} : vector<8x3xf32> to vector<8x1xf32>
    %12 = vector.extract_strided_slice %1 {offsets = [1, 0], sizes = [1, 256], strides = [1, 1]} : vector<3x256xf32> to vector<1x256xf32>
    %13 = vector.broadcast %11 : vector<8x1xf32> to vector<8x256xf32>
    %14 = vector.broadcast %12 : vector<1x256xf32> to vector<8x256xf32>
    %15 = arith.mulf %13, %14 : vector<8x256xf32>
    %16 = arith.addf %10, %15 : vector<8x256xf32>
    %17 = vector.extract_strided_slice %0 {offsets = [0, 2], sizes = [8, 1], strides = [1, 1]} : vector<8x3xf32> to vector<8x1xf32>
    %18 = vector.extract_strided_slice %1 {offsets = [2, 0], sizes = [1, 256], strides = [1, 1]} : vector<3x256xf32> to vector<1x256xf32>
    %19 = vector.broadcast %17 : vector<8x1xf32> to vector<8x256xf32>
    %20 = vector.broadcast %18 : vector<1x256xf32> to vector<8x256xf32>
    %21 = arith.mulf %19, %20 : vector<8x256xf32>
    %22 = arith.addf %16, %21 : vector<8x256xf32>
    %cst = arith.constant 0.000000e+00 : f32
    %23 = vector.broadcast %cst : f32 to vector<8x256xf32>
    %24 = arith.maximumf %22, %23 : vector<8x256xf32>
    %c0_5 = arith.constant 0 : index
    %c0_6 = arith.constant 0 : index
    %25 = vector.load %arg4[%c0_5, %c0_6] : memref<1x256xf32, #tpu.memory_space<vmem>>, vector<1x256xf32>
    %c0_7 = arith.constant 0 : index
    %c0_8 = arith.constant 0 : index
    %26 = vector.load %arg5[%c0_7, %c0_8] : memref<1x256xf32, #tpu.memory_space<vmem>>, vector<1x256xf32>
    %cst_9 = arith.constant dense<0.000000e+00> : vector<8xf32>
    %27 = vector.multi_reduction <add>, %24, %cst_9 [1] : vector<8x256xf32> to vector<8xf32>
    %28 = vector.shape_cast %27 : vector<8xf32> to vector<8x1xf32>
    %29 = arith.mulf %24, %24 : vector<8x256xf32>
    %cst_10 = arith.constant dense<0.000000e+00> : vector<8xf32>
    %30 = vector.multi_reduction <add>, %29, %cst_10 [1] : vector<8x256xf32> to vector<8xf32>
    %31 = vector.shape_cast %30 : vector<8xf32> to vector<8x1xf32>
    %cst_11 = arith.constant 3.906250e-03 : f32
    %32 = vector.broadcast %cst_11 : f32 to vector<8x1xf32>
    %33 = arith.mulf %28, %32 : vector<8x1xf32>
    %cst_12 = arith.constant 3.906250e-03 : f32
    %34 = vector.broadcast %cst_12 : f32 to vector<8x1xf32>
    %35 = arith.mulf %31, %34 : vector<8x1xf32>
    %36 = arith.mulf %33, %33 : vector<8x1xf32>
    %37 = arith.subf %35, %36 : vector<8x1xf32>
    %38 = vector.broadcast %33 : vector<8x1xf32> to vector<8x256xf32>
    %39 = arith.subf %24, %38 : vector<8x256xf32>
    %cst_13 = arith.constant 9.99999974E-6 : f32
    %40 = vector.broadcast %cst_13 : f32 to vector<8x1xf32>
    %41 = arith.addf %37, %40 : vector<8x1xf32>
    %42 = math.rsqrt %41 : vector<8x1xf32>
    %43 = vector.broadcast %42 : vector<8x1xf32> to vector<8x256xf32>
    %44 = arith.mulf %39, %43 : vector<8x256xf32>
    %45 = vector.broadcast %25 : vector<1x256xf32> to vector<8x256xf32>
    %46 = arith.mulf %44, %45 : vector<8x256xf32>
    %47 = vector.broadcast %26 : vector<1x256xf32> to vector<8x256xf32>
    %48 = arith.addf %46, %47 : vector<8x256xf32>
    %49 = arith.truncf %48 : vector<8x256xf32> to vector<8x256xbf16>
    %c0_14 = arith.constant 0 : index
    %c0_15 = arith.constant 0 : index
    %50 = vector.load %arg6[%c0_14, %c0_15] : memref<256x256xbf16, #tpu.memory_space<vmem>>, vector<256x256xbf16>
    %cst_16 = arith.constant dense<0.000000e+00> : vector<8x256xf32>
    %51 = tpu.matmul %49, %50, %cst_16 {dimension_numbers = #tpu.dot_dimension_numbers<[1], [0], [0], [1], [0, 0, 1, 1], [], []>} : vector<8x256xbf16>, vector<256x256xbf16>, vector<8x256xf32> -> vector<8x256xf32>
    %c0_17 = arith.constant 0 : index
    %c0_18 = arith.constant 0 : index
    %52 = vector.load %arg7[%c0_17, %c0_18] : memref<1x256xf32, #tpu.memory_space<vmem>>, vector<1x256xf32>
    %53 = vector.broadcast %52 : vector<1x256xf32> to vector<8x256xf32>
    %54 = arith.addf %51, %53 : vector<8x256xf32>
    %cst_19 = arith.constant 0.000000e+00 : f32
    %55 = vector.broadcast %cst_19 : f32 to vector<8x256xf32>
    %56 = arith.maximumf %54, %55 : vector<8x256xf32>
    %c0_20 = arith.constant 0 : index
    %c0_21 = arith.constant 0 : index
    %57 = vector.load %arg8[%c0_20, %c0_21] : memref<1x256xf32, #tpu.memory_space<vmem>>, vector<1x256xf32>
    %c0_22 = arith.constant 0 : index
    %c0_23 = arith.constant 0 : index
    %58 = vector.load %arg9[%c0_22, %c0_23] : memref<1x256xf32, #tpu.memory_space<vmem>>, vector<1x256xf32>
    %cst_24 = arith.constant dense<0.000000e+00> : vector<8xf32>
    %59 = vector.multi_reduction <add>, %56, %cst_24 [1] : vector<8x256xf32> to vector<8xf32>
    %60 = vector.shape_cast %59 : vector<8xf32> to vector<8x1xf32>
    %61 = arith.mulf %56, %56 : vector<8x256xf32>
    %cst_25 = arith.constant dense<0.000000e+00> : vector<8xf32>
    %62 = vector.multi_reduction <add>, %61, %cst_25 [1] : vector<8x256xf32> to vector<8xf32>
    %63 = vector.shape_cast %62 : vector<8xf32> to vector<8x1xf32>
    %cst_26 = arith.constant 3.906250e-03 : f32
    %64 = vector.broadcast %cst_26 : f32 to vector<8x1xf32>
    %65 = arith.mulf %60, %64 : vector<8x1xf32>
    %cst_27 = arith.constant 3.906250e-03 : f32
    %66 = vector.broadcast %cst_27 : f32 to vector<8x1xf32>
    %67 = arith.mulf %63, %66 : vector<8x1xf32>
    %68 = arith.mulf %65, %65 : vector<8x1xf32>
    %69 = arith.subf %67, %68 : vector<8x1xf32>
    %70 = vector.broadcast %65 : vector<8x1xf32> to vector<8x256xf32>
    %71 = arith.subf %56, %70 : vector<8x256xf32>
    %cst_28 = arith.constant 9.99999974E-6 : f32
    %72 = vector.broadcast %cst_28 : f32 to vector<8x1xf32>
    %73 = arith.addf %69, %72 : vector<8x1xf32>
    %74 = math.rsqrt %73 : vector<8x1xf32>
    %75 = vector.broadcast %74 : vector<8x1xf32> to vector<8x256xf32>
    %76 = arith.mulf %71, %75 : vector<8x256xf32>
    %77 = vector.broadcast %57 : vector<1x256xf32> to vector<8x256xf32>
    %78 = arith.mulf %76, %77 : vector<8x256xf32>
    %79 = vector.broadcast %58 : vector<1x256xf32> to vector<8x256xf32>
    %80 = arith.addf %78, %79 : vector<8x256xf32>
    %81 = arith.truncf %80 : vector<8x256xf32> to vector<8x256xbf16>
    %c0_29 = arith.constant 0 : index
    %c0_30 = arith.constant 0 : index
    %82 = vector.load %arg10[%c0_29, %c0_30] : memref<256x128xbf16, #tpu.memory_space<vmem>>, vector<256x128xbf16>
    %cst_31 = arith.constant dense<0.000000e+00> : vector<8x128xf32>
    %83 = tpu.matmul %81, %82, %cst_31 {dimension_numbers = #tpu.dot_dimension_numbers<[1], [0], [0], [1], [0, 0, 1, 1], [], []>} : vector<8x256xbf16>, vector<256x128xbf16>, vector<8x128xf32> -> vector<8x128xf32>
    %c0_32 = arith.constant 0 : index
    %c0_33 = arith.constant 0 : index
    %84 = vector.load %arg11[%c0_32, %c0_33] : memref<1x128xf32, #tpu.memory_space<vmem>>, vector<1x128xf32>
    %85 = vector.broadcast %84 : vector<1x128xf32> to vector<8x128xf32>
    %86 = arith.addf %83, %85 : vector<8x128xf32>
    %c0_34 = arith.constant 0 : index
    %c0_35 = arith.constant 0 : index
    %87 = vector.load %arg12[%c0_34, %c0_35] : memref<8x128xf32, #tpu.memory_space<vmem>>, vector<8x128xf32>
    tpu.vector_store %arg12[%c0_34, %c0_35], %86 {strides = array<i32>} : memref<8x128xf32, #tpu.memory_space<vmem>>, vector<8x128xf32>,
    return
  }
  func.func @transform_0(%arg0: i32) -> (i32, i32) {
    %c0_i32 = arith.constant 0 : i32
    %c0_i32_0 = arith.constant 0 : i32
    return %arg0, %c0_i32 : i32, i32
  }
  func.func @transform_1(%arg0: i32) -> (i32, i32) {
    %c0_i32 = arith.constant 0 : i32
    %c0_i32_0 = arith.constant 0 : i32
    %c0_i32_1 = arith.constant 0 : i32
    return %c0_i32, %c0_i32_0 : i32, i32
  }
  func.func @transform_2(%arg0: i32) -> (i32, i32) {
    %c0_i32 = arith.constant 0 : i32
    %c0_i32_0 = arith.constant 0 : i32
    %c0_i32_1 = arith.constant 0 : i32
    return %c0_i32, %c0_i32_0 : i32, i32
  }
  func.func @transform_3(%arg0: i32) -> (i32, i32) {
    %c0_i32 = arith.constant 0 : i32
    %c0_i32_0 = arith.constant 0 : i32
    %c0_i32_1 = arith.constant 0 : i32
    return %c0_i32, %c0_i32_0 : i32, i32
  }
  func.func @transform_4(%arg0: i32) -> (i32, i32) {
    %c0_i32 = arith.constant 0 : i32
    %c0_i32_0 = arith.constant 0 : i32
    %c0_i32_1 = arith.constant 0 : i32
    return %c0_i32, %c0_i32_0 : i32, i32
  }
  func.func @transform_5(%arg0: i32) -> (i32, i32) {
    %c0_i32 = arith.constant 0 : i32
    %c0_i32_0 = arith.constant 0 : i32
    %c0_i32_1 = arith.constant 0 : i32
    return %c0_i32, %c0_i32_0 : i32, i32
  }
  func.func @transform_6(%arg0: i32) -> (i32, i32) {
    %c0_i32 = arith.constant 0 : i32
    %c0_i32_0 = arith.constant 0 : i32
    %c0_i32_1 = arith.constant 0 : i32
    return %c0_i32, %c0_i32_0 : i32, i32
  }
  func.func @transform_7(%arg0: i32) -> (i32, i32) {
    %c0_i32 = arith.constant 0 : i32
    %c0_i32_0 = arith.constant 0 : i32
    %c0_i32_1 = arith.constant 0 : i32
    return %c0_i32, %c0_i32_0 : i32, i32
  }
  func.func @transform_8(%arg0: i32) -> (i32, i32) {
    %c0_i32 = arith.constant 0 : i32
    %c0_i32_0 = arith.constant 0 : i32
    %c0_i32_1 = arith.constant 0 : i32
    return %c0_i32, %c0_i32_0 : i32, i32
  }
  func.func @transform_9(%arg0: i32) -> (i32, i32) {
    %c0_i32 = arith.constant 0 : i32
    %c0_i32_0 = arith.constant 0 : i32
    %c0_i32_1 = arith.constant 0 : i32
    return %c0_i32, %c0_i32_0 : i32, i32
  }
  func.func @transform_10(%arg0: i32) -> (i32, i32) {
    %c0_i32 = arith.constant 0 : i32
    %c0_i32_0 = arith.constant 0 : i32
    %c0_i32_1 = arith.constant 0 : i32
    return %c0_i32, %c0_i32_0 : i32, i32
  }
  func.func @transform_11(%arg0: i32) -> (i32, i32) {
    %c0_i32 = arith.constant 0 : i32
    %c0_i32_0 = arith.constant 0 : i32
    return %arg0, %c0_i32 : i32, i32
  }
}

</mosaic_0001>

<llo_original>
// kernel: tpu_custom_call.1
$region0: #{tpu_custom_call.1}
  #allocation0 [shape = 'u32[]', space=smem, size = 0x4, offset = 0x4, fixed_abs, tag = 'smem constant byte address 0x4 - core index']
  #allocation1 [shape = 'u32[144,128]{1,0:T(1,128)}', space=vmem, size = 0x12000, scoped, tag = 'internal scratch']
  %s0 = inlined_call_operand.vmem [shape: f32[8,3], index: 0, kind: input, shape index: {}]
  %s1 = inlined_call_operand.vmem [shape: f32[3,256], index: 1, kind: input, shape index: {}]
  %s2 = inlined_call_operand.vmem [shape: f32[1,256], index: 2, kind: input, shape index: {}]
  %s3 = inlined_call_operand.vmem [shape: f32[1,256], index: 3, kind: input, shape index: {}]
  %s4 = inlined_call_operand.vmem [shape: f32[1,256], index: 4, kind: input, shape index: {}]
  %s5 = inlined_call_operand.hbm [shape: bf16[256,256], index: 5, kind: input, shape index: {}]
  %s6 = inlined_call_operand.vmem [shape: f32[1,256], index: 6, kind: input, shape index: {}]
  %s7 = inlined_call_operand.vmem [shape: f32[1,256], index: 7, kind: input, shape index: {}]
  %s8 = inlined_call_operand.vmem [shape: f32[1,256], index: 8, kind: input, shape index: {}]
  %s9 = inlined_call_operand.hbm [shape: bf16[256,128], index: 9, kind: input, shape index: {}]
  %s10 = inlined_call_operand.vmem [shape: f32[1,128], index: 10, kind: input, shape index: {}]
  %s11 = inlined_call_operand.hbm [shape: f32[8,128], index: 11, kind: output, shape index: {}]
  %s12 = sld [smem:[#allocation0]]
  $region62: #{tpu_custom_call.1} parent=0
    _
  %s14 = ssub.s32 1, %s12
  %s15 = scalar_select 0, %s14, %s12
  $region1: #{tpu_custom_call.1} parent=0
    #allocation2 [shape = 'u8[131072]{0}', space=vmem, size = 0x20000, scoped, tag = 'input window, operand 5, single buffered']
    #allocation3 [shape = 's32[1]{0}', space=sflag, size = 0x4, scoped, tag = 'scoped memory for tpu_custom_call.1']
    #allocation4 [shape = 's32[1]{0}', space=sflag, size = 0x4, scoped, tag = 'scoped memory for tpu_custom_call.1']
    #allocation5 [shape = 'u8[65536]{0}', space=vmem, size = 0x10000, scoped, tag = 'input window, operand 9, single buffered']
    #allocation6 [shape = 's32[1]{0}', space=sflag, size = 0x4, scoped, tag = 'scoped memory for tpu_custom_call.1']
    #allocation7 [shape = 'u8[4096]{0}', space=vmem, size = 0x1000, scoped, tag = 'output window, operand 0, single buffered']
    %16 = vsyncpa [#allocation3], 0
    %17 = vsyncpa [#allocation6], 0
    %18 = vsyncpa [#allocation4], 0
    // Predicated region
    $region2: #{tpu_custom_call.1} parent=1 // pred_check
      _
    $region3: #{tpu_custom_call.1} parent=1 // pred_check_branch
      %20 = sbr.rel (0) target = $region5
    $region4: #{tpu_custom_call.1} parent=1 // pred_region
      _
    $region5: #{tpu_custom_call.1} parent=1 // pred_fallthru
      _
    // Predicated region
    $region6: #{tpu_custom_call.1} parent=1 // pred_check
      _
    $region7: #{tpu_custom_call.1} parent=1 // pred_check_branch
      %22 = sbr.rel (0) target = $region9
    $region8: #{tpu_custom_call.1} parent=1 // pred_region
      _
    $region9: #{tpu_custom_call.1} parent=1 // pred_fallthru
      _
    // Predicated region
    $region10: #{tpu_custom_call.1} parent=1 // pred_check
      _
    $region11: #{tpu_custom_call.1} parent=1 // pred_check_branch
      %24 = sbr.rel (0) target = $region13
    $region12: #{tpu_custom_call.1} parent=1 // pred_region
      _
    $region13: #{tpu_custom_call.1} parent=1 // pred_fallthru
      _
    // Predicated region
    $region14: #{tpu_custom_call.1} parent=1 // pred_check
      _
    $region15: #{tpu_custom_call.1} parent=1 // pred_check_branch
      %26 = sbr.rel (0) target = $region17
    $region16: #{tpu_custom_call.1} parent=1 // pred_region
      _
    $region17: #{tpu_custom_call.1} parent=1 // pred_fallthru
      _
    // Predicated region
    $region18: #{tpu_custom_call.1} parent=1 // pred_check
      _
    $region19: #{tpu_custom_call.1} parent=1 // pred_check_branch
      %28 = sbr.rel (0) target = $region21
    $region20: #{tpu_custom_call.1} parent=1 // pred_region
      _
    $region21: #{tpu_custom_call.1} parent=1 // pred_fallthru
      _
    // Predicated region
    $region22: #{tpu_custom_call.1} parent=1 // pred_check
      _
    $region23: #{tpu_custom_call.1} parent=1 // pred_check_branch
      %30 = sbr.rel (0) target = $region25
    $region24: #{tpu_custom_call.1} parent=1 // pred_region
      %s32 = ssub.s32 4096, 4096
      %33 = vsyncadd [#allocation3], %s32
      %s34 = sshll.u32 [#allocation2], 4
      %s35 = int_to_ptr.vmem [resolvable:$true] %s34
      %40 = dma.hbm_to_vmem [thread:$0]  %s5, 4096, %s35, [#allocation3], 128, 128, 8
    $region25: #{tpu_custom_call.1} parent=1 // pred_fallthru
      _
    // Predicated region
    $region26: #{tpu_custom_call.1} parent=1 // pred_check
      _
    $region27: #{tpu_custom_call.1} parent=1 // pred_check_branch
      %42 = sbr.rel (0) target = $region29
    $region28: #{tpu_custom_call.1} parent=1 // pred_region
      _
    $region29: #{tpu_custom_call.1} parent=1 // pred_fallthru
      _
    // Predicated region
    $region30: #{tpu_custom_call.1} parent=1 // pred_check
      _
    $region31: #{tpu_custom_call.1} parent=1 // pred_check_branch
      %44 = sbr.rel (0) target = $region33
    $region32: #{tpu_custom_call.1} parent=1 // pred_region
      _
    $region33: #{tpu_custom_call.1} parent=1 // pred_fallthru
      _
    // Predicated region
    $region34: #{tpu_custom_call.1} parent=1 // pred_check
      _
    $region35: #{tpu_custom_call.1} parent=1 // pred_check_branch
      %46 = sbr.rel (0) target = $region37
    $region36: #{tpu_custom_call.1} parent=1 // pred_region
      _
    $region37: #{tpu_custom_call.1} parent=1 // pred_fallthru
      _
    // Predicated region
    $region38: #{tpu_custom_call.1} parent=1 // pred_check
      _
    $region39: #{tpu_custom_call.1} parent=1 // pred_check_branch
      %48 = sbr.rel (0) target = $region41
    $region40: #{tpu_custom_call.1} parent=1 // pred_region
      %s50 = ssub.s32 2048, 2048
      %51 = vsyncadd [#allocation6], %s50
      %s52 = sshll.u32 [#allocation5], 4
      %s53 = int_to_ptr.vmem [resolvable:$true] %s52
      %58 = dma.hbm_to_vmem [thread:$0]  %s9, 2048, %s53, [#allocation6], 64, 64, 4
    $region41: #{tpu_custom_call.1} parent=1 // pred_fallthru
      _
    // Predicated region
    $region42: #{tpu_custom_call.1} parent=1 // pred_check
      _
    $region43: #{tpu_custom_call.1} parent=1 // pred_check_branch
      %60 = sbr.rel (0) target = $region45
    $region44: #{tpu_custom_call.1} parent=1 // pred_region
      _
    $region45: #{tpu_custom_call.1} parent=1 // pred_fallthru
      _
    // Predicated region
    $region46: #{tpu_custom_call.1} parent=1 // pred_check
      _
    $region47: #{tpu_custom_call.1} parent=1 // pred_check_branch
      %62 = sbr.rel (0) target = $region49
    $region48: #{tpu_custom_call.1} parent=1 // pred_region
      %63 = dma.done [#allocation3], 4096
    $region49: #{tpu_custom_call.1} parent=1 // pred_fallthru
      _
    // Predicated region
    $region50: #{tpu_custom_call.1} parent=1 // pred_check
      _
    $region51: #{tpu_custom_call.1} parent=1 // pred_check_branch
      %65 = sbr.rel (0) target = $region53
    $region52: #{tpu_custom_call.1} parent=1 // pred_region
      %66 = dma.done [#allocation6], 2048
    $region53: #{tpu_custom_call.1} parent=1 // pred_fallthru
      _
    %v68 = vld [vmem:[%s0] sm:$0xff]
    %v69 = vld [vmem:[%s1] sm:$0x77]
    %v70 = vld [vmem:[%s2] sm:$0x3]
    %v72 = vlaneseq
    %v73 = vshrl.u32 %v72, 7
    %v74 = vsub.s32 0, %v73
    %v75 = vrot.slane %v70, %v74
    %v76 = vlaneseq
    %v77 = vshrl.u32 %v76, 7
    %v78 = vsub.s32 1, %v77
    %v79 = vrot.slane %v70, %v78
    %83 = vset.pattern.permute.xlu0 0
    %84 = vperm.xlu0 %83, %v68
    %v85 = vpop.permute.xlu0 %84
    %v88 = vlaneseq
    %v89 = vshrl.u32 %v88, 7
    %v90 = vsub.s32 0, %v89
    %v91 = vrot.slane %v69, %v90
    %v92 = vlaneseq
    %v93 = vshrl.u32 %v92, 7
    %v94 = vsub.s32 4, %v93
    %v95 = vrot.slane %v69, %v94
    %v98 = vlaneseq
    %v99 = vshrl.u32 %v98, 7
    %v100 = vsub.s32 0, %v99
    %v101 = vrot.slane %v91, %v100
    %v102 = vlaneseq
    %v103 = vshrl.u32 %v102, 7
    %v104 = vsub.s32 0, %v103
    %v105 = vrot.slane %v95, %v104
    %v106 = vmul.f32 %v85, %v101
    %v107 = vmul.f32 %v85, %v105
    %v108 = vadd.f32 %v75, %v106
    %v109 = vadd.f32 %v79, %v107
    %110 = vset.pattern.permute.xlu0 1
    %111 = vperm.xlu0 %110, %v68
    %v112 = vpop.permute.xlu0 %111
    %v114 = vlaneseq
    %v115 = vshrl.u32 %v114, 7
    %v116 = vsub.s32 1, %v115
    %v117 = vrot.slane %v69, %v116
    %v118 = vlaneseq
    %v119 = vshrl.u32 %v118, 7
    %v120 = vsub.s32 5, %v119
    %v121 = vrot.slane %v69, %v120
    %v124 = vlaneseq
    %v125 = vshrl.u32 %v124, 7
    %v126 = vsub.s32 1, %v125
    %v127 = vrot.slane %v117, %v126
    %v128 = vlaneseq
    %v129 = vshrl.u32 %v128, 7
    %v130 = vsub.s32 1, %v129
    %v131 = vrot.slane %v121, %v130
    %v132 = vmul.f32 %v112, %v127
    %v133 = vmul.f32 %v112, %v131
    %v134 = vadd.f32 %v108, %v132
    %v135 = vadd.f32 %v109, %v133
    %136 = vset.pattern.permute.xlu0 2
    %137 = vperm.xlu0 %136, %v68
    %v138 = vpop.permute.xlu0 %137
    %v140 = vlaneseq
    %v141 = vshrl.u32 %v140, 7
    %v142 = vsub.s32 2, %v141
    %v143 = vrot.slane %v69, %v142
    %v144 = vlaneseq
    %v145 = vshrl.u32 %v144, 7
    %v146 = vsub.s32 6, %v145
    %v147 = vrot.slane %v69, %v146
    %v150 = vlaneseq
    %v151 = vshrl.u32 %v150, 7
    %v152 = vsub.s32 2, %v151
    %v153 = vrot.slane %v143, %v152
    %v154 = vlaneseq
    %v155 = vshrl.u32 %v154, 7
    %v156 = vsub.s32 2, %v155
    %v157 = vrot.slane %v147, %v156
    %v158 = vmul.f32 %v138, %v153
    %v159 = vmul.f32 %v138, %v157
    %v160 = vadd.f32 %v134, %v158
    %v161 = vadd.f32 %v135, %v159
    %v162 = vmax.f32 %v160, 0.0
    %v163 = vmax.f32 %v161, 0.0
    %v164 = vld [vmem:[%s3] sm:$0x3]
    %v165 = vld [vmem:[%s4] sm:$0x3]
    %v166 = vadd.f32 %v162, %v163
    %167 = vadd.xlane.f32.xlu0 %v166
    %v168 = vpop.xlane.xlu0 %167
    %v169 = vmul.f32 %v162, %v162
    %v170 = vmul.f32 %v163, %v163
    %v171 = vadd.f32 %v169, %v170
    %172 = vadd.xlane.f32.xlu0 %v171
    %v173 = vpop.xlane.xlu0 %172
    %v174 = vmul.f32 %v168, 0.00390625
    %v175 = vmul.f32 %v173, 0.00390625
    %v176 = vmul.f32 %v174, %v174
    %v177 = vsub.f32 %v175, %v176
    %v178 = vsub.f32 %v162, %v174
    %v179 = vsub.f32 %v163, %v174
    %v180 = vadd.f32 %v177, 1e-05
    %v181 = vrsqrt.pop %v180
    %v182 = vmul.f32 %v178, %v181
    %v183 = vmul.f32 %v179, %v181
    %v185 = vlaneseq
    %v186 = vshrl.u32 %v185, 7
    %v187 = vsub.s32 0, %v186
    %v188 = vrot.slane %v164, %v187
    %v189 = vlaneseq
    %v190 = vshrl.u32 %v189, 7
    %v191 = vsub.s32 1, %v190
    %v192 = vrot.slane %v164, %v191
    %v195 = vmul.f32 %v182, %v188
    %v196 = vmul.f32 %v183, %v192
    %v198 = vlaneseq
    %v199 = vshrl.u32 %v198, 7
    %v200 = vsub.s32 0, %v199
    %v201 = vrot.slane %v165, %v200
    %v202 = vlaneseq
    %v203 = vshrl.u32 %v202, 7
    %v204 = vsub.s32 1, %v203
    %v205 = vrot.slane %v165, %v204
    %v208 = vadd.f32 %v195, %v201
    %v209 = vadd.f32 %v196, %v205
    %v210 = vpack.c.bf16 %v208, %v208
    %v211 = vpack.c.bf16 %v209, %v209
    %v212 = vld [vmem:[#allocation2] sm:$0xff]
    %v213 = vld [vmem:[#allocation2 + $0x8] sm:$0xff]
    %v214 = vld [vmem:[#allocation2 + $0x10] sm:$0xff]
    %v215 = vld [vmem:[#allocation2 + $0x18] sm:$0xff]
    %v216 = vld [vmem:[#allocation2 + $0x20] sm:$0xff]
    %v217 = vld [vmem:[#allocation2 + $0x28] sm:$0xff]
    %v218 = vld [vmem:[#allocation2 + $0x30] sm:$0xff]
    %v219 = vld [vmem:[#allocation2 + $0x38] sm:$0xff]
    %v220 = vld [vmem:[#allocation2 + $0x40] sm:$0xff]
    %v221 = vld [vmem:[#allocation2 + $0x48] sm:$0xff]
    %v222 = vld [vmem:[#allocation2 + $0x50] sm:$0xff]
    %v223 = vld [vmem:[#allocation2 + $0x58] sm:$0xff]
    %v224 = vld [vmem:[#allocation2 + $0x60] sm:$0xff]
    %v225 = vld [vmem:[#allocation2 + $0x68] sm:$0xff]
    %v226 = vld [vmem:[#allocation2 + $0x70] sm:$0xff]
    %v227 = vld [vmem:[#allocation2 + $0x78] sm:$0xff]
    %v228 = vld [vmem:[#allocation2 + $0x80] sm:$0xff]
    %v229 = vld [vmem:[#allocation2 + $0x88] sm:$0xff]
    %v230 = vld [vmem:[#allocation2 + $0x90] sm:$0xff]
    %v231 = vld [vmem:[#allocation2 + $0x98] sm:$0xff]
    %v232 = vld [vmem:[#allocation2 + $0xa0] sm:$0xff]
    %v233 = vld [vmem:[#allocation2 + $0xa8] sm:$0xff]
    %v234 = vld [vmem:[#allocation2 + $0xb0] sm:$0xff]
    %v235 = vld [vmem:[#allocation2 + $0xb8] sm:$0xff]
    %v236 = vld [vmem:[#allocation2 + $0xc0] sm:$0xff]
    %v237 = vld [vmem:[#allocation2 + $0xc8] sm:$0xff]
    %v238 = vld [vmem:[#allocation2 + $0xd0] sm:$0xff]
    %v239 = vld [vmem:[#allocation2 + $0xd8] sm:$0xff]
    %v240 = vld [vmem:[#allocation2 + $0xe0] sm:$0xff]
    %v241 = vld [vmem:[#allocation2 + $0xe8] sm:$0xff]
    %v242 = vld [vmem:[#allocation2 + $0xf0] sm:$0xff]
    %v243 = vld [vmem:[#allocation2 + $0xf8] sm:$0xff]
    %v244 = vld [vmem:[%s6] sm:$0x3]
    %v246 = vlaneseq
    %v247 = vshrl.u32 %v246, 7
    %v248 = vsub.s32 0, %v247
    %v249 = vrot.slane %v244, %v248
    %v250 = vlaneseq
    %v251 = vshrl.u32 %v250, 7
    %v252 = vsub.s32 1, %v251
    %v253 = vrot.slane %v244, %v252
    %v288 = vunpack.c.l.b16 %v212
    %v289 = vunpack.c.h.b16 %v212
    %v290 = vunpack.c.l.b16 %v213
    %v291 = vunpack.c.h.b16 %v213
    %v292 = vunpack.c.l.b16 %v214
    %v293 = vunpack.c.h.b16 %v214
    %v294 = vunpack.c.l.b16 %v215
    %v295 = vunpack.c.h.b16 %v215
    %v296 = vunpack.c.l.b16 %v216
    %v297 = vunpack.c.h.b16 %v216
    %v298 = vunpack.c.l.b16 %v217
    %v299 = vunpack.c.h.b16 %v217
    %v300 = vunpack.c.l.b16 %v218
    %v301 = vunpack.c.h.b16 %v218
    %v302 = vunpack.c.l.b16 %v219
    %v303 = vunpack.c.h.b16 %v219
    %v304 = vunpack.c.l.b16 %v220
    %v305 = vunpack.c.h.b16 %v220
    %v306 = vunpack.c.l.b16 %v221
    %v307 = vunpack.c.h.b16 %v221
    %v308 = vunpack.c.l.b16 %v222
    %v309 = vunpack.c.h.b16 %v222
    %v310 = vunpack.c.l.b16 %v223
    %v311 = vunpack.c.h.b16 %v223
    %v312 = vunpack.c.l.b16 %v224
    %v313 = vunpack.c.h.b16 %v224
    %v314 = vunpack.c.l.b16 %v225
    %v315 = vunpack.c.h.b16 %v225
    %v316 = vunpack.c.l.b16 %v226
    %v317 = vunpack.c.h.b16 %v226
    %v318 = vunpack.c.l.b16 %v227
    %v319 = vunpack.c.h.b16 %v227
    %v320 = vunpack.c.l.b16 %v228
    %v321 = vunpack.c.h.b16 %v228
    %v322 = vunpack.c.l.b16 %v229
    %v323 = vunpack.c.h.b16 %v229
    %v324 = vunpack.c.l.b16 %v230
    %v325 = vunpack.c.h.b16 %v230
    %v326 = vunpack.c.l.b16 %v231
    %v327 = vunpack.c.h.b16 %v231
    %v328 = vunpack.c.l.b16 %v232
    %v329 = vunpack.c.h.b16 %v232
    %v330 = vunpack.c.l.b16 %v233
    %v331 = vunpack.c.h.b16 %v233
    %v332 = vunpack.c.l.b16 %v234
    %v333 = vunpack.c.h.b16 %v234
    %v334 = vunpack.c.l.b16 %v235
    %v335 = vunpack.c.h.b16 %v235
    %v336 = vunpack.c.l.b16 %v236
    %v337 = vunpack.c.h.b16 %v236
    %v338 = vunpack.c.l.b16 %v237
    %v339 = vunpack.c.h.b16 %v237
    %v340 = vunpack.c.l.b16 %v238
    %v341 = vunpack.c.h.b16 %v238
    %v342 = vunpack.c.l.b16 %v239
    %v343 = vunpack.c.h.b16 %v239
    %v344 = vunpack.c.l.b16 %v240
    %v345 = vunpack.c.h.b16 %v240
    %v346 = vunpack.c.l.b16 %v241
    %v347 = vunpack.c.h.b16 %v241
    %v348 = vunpack.c.l.b16 %v242
    %v349 = vunpack.c.h.b16 %v242
    %v350 = vunpack.c.l.b16 %v243
    %v351 = vunpack.c.h.b16 %v243
    %v352 = vpack.c.b16 %v290, %v288
    %v353 = vpack.c.b16 %v291, %v289
    %v354 = vpack.c.b16 %v294, %v292
    %v355 = vpack.c.b16 %v295, %v293
    %v356 = vpack.c.b16 %v298, %v296
    %v357 = vpack.c.b16 %v299, %v297
    %v358 = vpack.c.b16 %v302, %v300
    %v359 = vpack.c.b16 %v303, %v301
    %v360 = vpack.c.b16 %v306, %v304
    %v361 = vpack.c.b16 %v307, %v305
    %v362 = vpack.c.b16 %v310, %v308
    %v363 = vpack.c.b16 %v311, %v309
    %v364 = vpack.c.b16 %v314, %v312
    %v365 = vpack.c.b16 %v315, %v313
    %v366 = vpack.c.b16 %v318, %v316
    %v367 = vpack.c.b16 %v319, %v317
    %v368 = vpack.c.b16 %v322, %v320
    %v369 = vpack.c.b16 %v323, %v321
    %v370 = vpack.c.b16 %v326, %v324
    %v371 = vpack.c.b16 %v327, %v325
    %v372 = vpack.c.b16 %v330, %v328
    %v373 = vpack.c.b16 %v331, %v329
    %v374 = vpack.c.b16 %v334, %v332
    %v375 = vpack.c.b16 %v335, %v333
    %v376 = vpack.c.b16 %v338, %v336
    %v377 = vpack.c.b16 %v339, %v337
    %v378 = vpack.c.b16 %v342, %v340
    %v379 = vpack.c.b16 %v343, %v341
    %v380 = vpack.c.b16 %v346, %v344
    %v381 = vpack.c.b16 %v347, %v345
    %v382 = vpack.c.b16 %v350, %v348
    %v383 = vpack.c.b16 %v351, %v349
    %416 = vmatprep.subr.bf16.mxu0 %v353
    %417 = vmatpush1.bf16.msra.mxu0 %v352
    %418 = vmatprep.subr.bf16.mxu0 %v355
    %419 = vmatpush1.bf16.msra.mxu0 %v354
    %420 = vmatprep.subr.bf16.mxu0 %v357
    %421 = vmatpush1.bf16.msra.mxu0 %v356
    %422 = vmatprep.subr.bf16.mxu0 %v359
    %423 = vmatpush1.bf16.msra.mxu0 %v358
    %424 = vmatprep.subr.bf16.mxu0 %v361
    %425 = vmatpush1.bf16.msra.mxu0 %v360
    %426 = vmatprep.subr.bf16.mxu0 %v363
    %427 = vmatpush1.bf16.msra.mxu0 %v362
    %428 = vmatprep.subr.bf16.mxu0 %v365
    %429 = vmatpush1.bf16.msra.mxu0 %v364
    %430 = vmatprep.subr.bf16.mxu0 %v367
    %431 = vmatpush1.bf16.msra.mxu0 %v366
    %432 = vmatprep.subr.bf16.mxu0 %v369
    %433 = vmatpush1.bf16.msra.mxu0 %v368
    %434 = vmatprep.subr.bf16.mxu0 %v371
    %435 = vmatpush1.bf16.msra.mxu0 %v370
    %436 = vmatprep.subr.bf16.mxu0 %v373
    %437 = vmatpush1.bf16.msra.mxu0 %v372
    %438 = vmatprep.subr.bf16.mxu0 %v375
    %439 = vmatpush1.bf16.msra.mxu0 %v374
    %440 = vmatprep.subr.bf16.mxu0 %v377
    %441 = vmatpush1.bf16.msra.mxu0 %v376
    %442 = vmatprep.subr.bf16.mxu0 %v379
    %443 = vmatpush1.bf16.msra.mxu0 %v378
    %444 = vmatprep.subr.bf16.mxu0 %v381
    %445 = vmatpush1.bf16.msra.mxu0 %v380
    %446 = vmatprep.subr.bf16.mxu0 %v383
    %447 = vmatpush1.bf16.msra.mxu0 %v382
    %448 = vmatprep.mubr.bf16.mxu0 %v211
    %449 = vmatmul.mubr.bf16.gmra.mrb[0].mxu0 %v210
    %v450 = vpop.f32.mrb[0].mxu0
    %v451 = vadd.f32 %v249, %v450
    %v452 = vpop.f32.mrb[0].mxu0
    %v453 = vadd.f32 %v253, %v452
    %v454 = vpop.f32.mrb[0].mxu0
    %v455 = vpop.f32.mrb[0].mxu0
    %456 = vdwg.mxu0
    %v457 = vmax.f32 %v451, 0.0
    %v458 = vmax.f32 %v453, 0.0
    %v459 = vld [vmem:[%s7] sm:$0x3]
    %v460 = vld [vmem:[%s8] sm:$0x3]
    %v461 = vadd.f32 %v457, %v458
    %462 = vadd.xlane.f32.xlu0 %v461
    %v463 = vpop.xlane.xlu0 %462
    %v464 = vmul.f32 %v457, %v457
    %v465 = vmul.f32 %v458, %v458
    %v466 = vadd.f32 %v464, %v465
    %467 = vadd.xlane.f32.xlu0 %v466
    %v468 = vpop.xlane.xlu0 %467
    %v469 = vmul.f32 %v463, 0.00390625
    %v470 = vmul.f32 %v468, 0.00390625
    %v471 = vmul.f32 %v469, %v469
    %v472 = vsub.f32 %v470, %v471
    %v473 = vsub.f32 %v457, %v469
    %v474 = vsub.f32 %v458, %v469
    %v475 = vadd.f32 %v472, 1e-05
    %v476 = vrsqrt.pop %v475
    %v477 = vmul.f32 %v473, %v476
    %v478 = vmul.f32 %v474, %v476
    %v480 = vlaneseq
    %v481 = vshrl.u32 %v480, 7
    %v482 = vsub.s32 0, %v481
    %v483 = vrot.slane %v459, %v482
    %v484 = vlaneseq
    %v485 = vshrl.u32 %v484, 7
    %v486 = vsub.s32 1, %v485
    %v487 = vrot.slane %v459, %v486
    %v490 = vmul.f32 %v477, %v483
    %v491 = vmul.f32 %v478, %v487
    %v493 = vlaneseq
    %v494 = vshrl.u32 %v493, 7
    %v495 = vsub.s32 0, %v494
    %v496 = vrot.slane %v460, %v495
    %v497 = vlaneseq
    %v498 = vshrl.u32 %v497, 7
    %v499 = vsub.s32 1, %v498
    %v500 = vrot.slane %v460, %v499
    %v503 = vadd.f32 %v490, %v496
    %v504 = vadd.f32 %v491, %v500
    %v505 = vpack.c.bf16 %v503, %v503
    %v506 = vpack.c.bf16 %v504, %v504
    %v507 = vld [vmem:[#allocation5] sm:$0xf]
    %v508 = vld [vmem:[#allocation5 + $0x4] sm:$0xf]
    %v509 = vld [vmem:[#allocation5 + $0x8] sm:$0xf]
    %v510 = vld [vmem:[#allocation5 + $0xc] sm:$0xf]
    %v511 = vld [vmem:[#allocation5 + $0x10] sm:$0xf]
    %v512 = vld [vmem:[#allocation5 + $0x14] sm:$0xf]
    %v513 = vld [vmem:[#allocation5 + $0x18] sm:$0xf]
    %v514 = vld [vmem:[#allocation5 + $0x1c] sm:$0xf]
    %v515 = vld [vmem:[#allocation5 + $0x20] sm:$0xf]
    %v516 = vld [vmem:[#allocation5 + $0x24] sm:$0xf]
    %v517 = vld [vmem:[#allocation5 + $0x28] sm:$0xf]
    %v518 = vld [vmem:[#allocation5 + $0x2c] sm:$0xf]
    %v519 = vld [vmem:[#allocation5 + $0x30] sm:$0xf]
    %v520 = vld [vmem:[#allocation5 + $0x34] sm:$0xf]
    %v521 = vld [vmem:[#allocation5 + $0x38] sm:$0xf]
    %v522 = vld [vmem:[#allocation5 + $0x3c] sm:$0xf]
    %v523 = vld [vmem:[#allocation5 + $0x40] sm:$0xf]
    %v524 = vld [vmem:[#allocation5 + $0x44] sm:$0xf]
    %v525 = vld [vmem:[#allocation5 + $0x48] sm:$0xf]
    %v526 = vld [vmem:[#allocation5 + $0x4c] sm:$0xf]
    %v527 = vld [vmem:[#allocation5 + $0x50] sm:$0xf]
    %v528 = vld [vmem:[#allocation5 + $0x54] sm:$0xf]
    %v529 = vld [vmem:[#allocation5 + $0x58] sm:$0xf]
    %v530 = vld [vmem:[#allocation5 + $0x5c] sm:$0xf]
    %v531 = vld [vmem:[#allocation5 + $0x60] sm:$0xf]
    %v532 = vld [vmem:[#allocation5 + $0x64] sm:$0xf]
    %v533 = vld [vmem:[#allocation5 + $0x68] sm:$0xf]
    %v534 = vld [vmem:[#allocation5 + $0x6c] sm:$0xf]
    %v535 = vld [vmem:[#allocation5 + $0x70] sm:$0xf]
    %v536 = vld [vmem:[#allocation5 + $0x74] sm:$0xf]
    %v537 = vld [vmem:[#allocation5 + $0x78] sm:$0xf]
    %v538 = vld [vmem:[#allocation5 + $0x7c] sm:$0xf]
    %v539 = vld [vmem:[%s10] sm:$0x1]
    %v541 = vlaneseq
    %v542 = vshrl.u32 %v541, 7
    %v543 = vsub.s32 0, %v542
    %v544 = vrot.slane %v539, %v543
    %v578 = vunpack.c.l.b16 %v507
    %v579 = vunpack.c.l.b16 %v508
    %v580 = vunpack.c.l.b16 %v509
    %v581 = vunpack.c.l.b16 %v510
    %v582 = vunpack.c.l.b16 %v511
    %v583 = vunpack.c.l.b16 %v512
    %v584 = vunpack.c.l.b16 %v513
    %v585 = vunpack.c.l.b16 %v514
    %v586 = vunpack.c.l.b16 %v515
    %v587 = vunpack.c.l.b16 %v516
    %v588 = vunpack.c.l.b16 %v517
    %v589 = vunpack.c.l.b16 %v518
    %v590 = vunpack.c.l.b16 %v519
    %v591 = vunpack.c.l.b16 %v520
    %v592 = vunpack.c.l.b16 %v521
    %v593 = vunpack.c.l.b16 %v522
    %v594 = vunpack.c.l.b16 %v523
    %v595 = vunpack.c.l.b16 %v524
    %v596 = vunpack.c.l.b16 %v525
    %v597 = vunpack.c.l.b16 %v526
    %v598 = vunpack.c.l.b16 %v527
    %v599 = vunpack.c.l.b16 %v528
    %v600 = vunpack.c.l.b16 %v529
    %v601 = vunpack.c.l.b16 %v530
    %v602 = vunpack.c.l.b16 %v531
    %v603 = vunpack.c.l.b16 %v532
    %v604 = vunpack.c.l.b16 %v533
    %v605 = vunpack.c.l.b16 %v534
    %v606 = vunpack.c.l.b16 %v535
    %v607 = vunpack.c.l.b16 %v536
    %v608 = vunpack.c.l.b16 %v537
    %v609 = vunpack.c.l.b16 %v538
    %v610 = vpack.c.b16 %v579, %v578
    %v611 = vpack.c.b16 %v581, %v580
    %v612 = vpack.c.b16 %v583, %v582
    %v613 = vpack.c.b16 %v585, %v584
    %v614 = vpack.c.b16 %v587, %v586
    %v615 = vpack.c.b16 %v589, %v588
    %v616 = vpack.c.b16 %v591, %v590
    %v617 = vpack.c.b16 %v593, %v592
    %v618 = vpack.c.b16 %v595, %v594
    %v619 = vpack.c.b16 %v597, %v596
    %v620 = vpack.c.b16 %v599, %v598
    %v621 = vpack.c.b16 %v601, %v600
    %v622 = vpack.c.b16 %v603, %v602
    %v623 = vpack.c.b16 %v605, %v604
    %v624 = vpack.c.b16 %v607, %v606
    %v625 = vpack.c.b16 %v609, %v608
    %642 = vmatprep.subr.bf16.mxu0 0
    %643 = vmatpush1.bf16.msra.mxu0 %v610
    %644 = vmatprep.subr.bf16.mxu0 0
    %645 = vmatpush1.bf16.msra.mxu0 %v611
    %646 = vmatprep.subr.bf16.mxu0 0
    %647 = vmatpush1.bf16.msra.mxu0 %v612
    %648 = vmatprep.subr.bf16.mxu0 0
    %649 = vmatpush1.bf16.msra.mxu0 %v613
    %650 = vmatprep.subr.bf16.mxu0 0
    %651 = vmatpush1.bf16.msra.mxu0 %v614
    %652 = vmatprep.subr.bf16.mxu0 0
    %653 = vmatpush1.bf16.msra.mxu0 %v615
    %654 = vmatprep.subr.bf16.mxu0 0
    %655 = vmatpush1.bf16.msra.mxu0 %v616
    %656 = vmatprep.subr.bf16.mxu0 0
    %657 = vmatpush1.bf16.msra.mxu0 %v617
    %658 = vmatprep.subr.bf16.mxu0 0
    %659 = vmatpush1.bf16.msra.mxu0 %v618
    %660 = vmatprep.subr.bf16.mxu0 0
    %661 = vmatpush1.bf16.msra.mxu0 %v619
    %662 = vmatprep.subr.bf16.mxu0 0
    %663 = vmatpush1.bf16.msra.mxu0 %v620
    %664 = vmatprep.subr.bf16.mxu0 0
    %665 = vmatpush1.bf16.msra.mxu0 %v621
    %666 = vmatprep.subr.bf16.mxu0 0
    %667 = vmatpush1.bf16.msra.mxu0 %v622
    %668 = vmatprep.subr.bf16.mxu0 0
    %669 = vmatpush1.bf16.msra.mxu0 %v623
    %670 = vmatprep.subr.bf16.mxu0 0
    %671 = vmatpush1.bf16.msra.mxu0 %v624
    %672 = vmatprep.subr.bf16.mxu0 0
    %673 = vmatpush1.bf16.msra.mxu0 %v625
    %674 = vmatprep.mubr.bf16.mxu0 %v506
    %675 = vmatmul.mubr.bf16.gmra.mrb[0].mxu0 %v505
    %v676 = vpop.f32.mrb[0].mxu0
    %v677 = vadd.f32 %v544, %v676
    %v678 = vpop.f32.mrb[0].mxu0
    %v679 = vpop.f32.mrb[0].mxu0
    %v680 = vpop.f32.mrb[0].mxu0
    %681 = vdwg.mxu0
    %682 = vst [vmem:[#allocation7] sm:$0xff] %v677
    // Predicated region
    $region54: #{tpu_custom_call.1} parent=1 // pred_check
      _
    $region55: #{tpu_custom_call.1} parent=1 // pred_check_branch
      %684 = sbr.rel (0) target = $region57
    $region56: #{tpu_custom_call.1} parent=1 // pred_region
      %s686 = ssub.s32 128, 128
      %687 = vsyncadd [#allocation4], %s686
      %s689 = sshll.u32 [#allocation7], 4
      %s690 = int_to_ptr.vmem [resolvable:$true] %s689
      %692 = dma.vmem_to_hbm [thread:$0]  %s690, 128, %s11, [#allocation4]
    $region57: #{tpu_custom_call.1} parent=1 // pred_fallthru
      _
    // Predicated region
    $region58: #{tpu_custom_call.1} parent=1 // pred_check
      _
    $region59: #{tpu_custom_call.1} parent=1 // pred_check_branch
      %694 = sbr.rel (0) target = $region61
    $region60: #{tpu_custom_call.1} parent=1 // pred_region
      %695 = dma.done [#allocation4], 128
    $region61: #{tpu_custom_call.1} parent=1 // pred_fallthru
      _
    %696 = vsyncpa [#allocation3], 1
    %697 = vsyncpa [#allocation6], 1
    %698 = vsyncpa [#allocation4], 1

</llo_original>
